<compile_context>
chip_gen: v7x
topology: tpu7x:2x2x1
jax: 0.10.0
libtpu: 0.0.40
codegen_flags: <defaults>
</compile_context>

<pallas_src>
import functools

import jax
import jax.numpy as jnp
from jax.experimental import pallas as pl
from jax.experimental.pallas import tpu as pltpu


def _round_up(x: int, m: int) -> int:
    return (x + m - 1) // m * m


def actor_mlp_kernel(xt_ref, w1_ref, b1_ref, w2_ref, b2_ref, o_ref):
    """One batch tile, batch-on-lanes layout.

    xt_ref : (obs_pad, TILE_B)  compute dtype   (streams per grid step)
    w1_ref : (hidden,  obs_pad) compute dtype   (VMEM-resident, PyTorch layout)
    b1_ref : (hidden,  1)       f32             (VMEM-resident)
    w2_ref : (act,     hidden)  compute dtype   (VMEM-resident)
    b2_ref : (act,     1)       f32             (VMEM-resident)
    o_ref  : (act,     TILE_B)  f32             (streams per grid step)
    """
    # Hidden layer: (hidden, obs_pad) @ (obs_pad, TILE_B) -> f32 accumulate on MXU.
    h = jnp.dot(w1_ref[...], xt_ref[...], preferred_element_type=jnp.float32)
    h = jnp.maximum(h + b1_ref[...], 0.0)
    # Output layer: (act, hidden) @ (hidden, TILE_B) -> f32 accumulate on MXU.
    out = jnp.dot(w2_ref[...], h.astype(w2_ref.dtype),
                  preferred_element_type=jnp.float32)
    o_ref[...] = (out + b2_ref[...]).astype(o_ref.dtype)


@functools.partial(jax.jit, static_argnames=("tile_b", "compute_dtype"))
def actor_forward(x, w1, b1, w2, b2, *, tile_b=512, compute_dtype=jnp.float32):
    """Forward pass matching torch: relu(x @ W1.T + b1) @ W2.T + b2.

    x  : (B, obs_dim) f32
    w1 : (hidden, obs_dim) f32   (PyTorch nn.Linear weight layout)
    b1 : (hidden,)         f32
    w2 : (act, hidden)     f32
    b2 : (act,)            f32
    returns (B, act) f32
    """
    B, obs = x.shape
    hidden = w1.shape[0]
    act = w2.shape[0]

    obs_pad = _round_up(obs, 32)                 # aligned contraction dim
    tile = min(tile_b, _round_up(B, 128))        # lane-dense batch tile
    b_pad = _round_up(B, tile)
    n_tiles = b_pad // tile

    # Batch-on-lanes: transpose + zero-pad (padding columns are sliced away below).
    xt = jnp.pad(x.T, ((0, obs_pad - obs), (0, b_pad - B))).astype(compute_dtype)
    w1p = jnp.pad(w1, ((0, 0), (0, obs_pad - obs))).astype(compute_dtype)
    w2c = w2.astype(compute_dtype)
    b1c = b1.reshape(hidden, 1).astype(jnp.float32)
    b2c = b2.reshape(act, 1).astype(jnp.float32)

    out_t = pl.pallas_call(
        actor_mlp_kernel,
        out_shape=jax.ShapeDtypeStruct((act, b_pad), jnp.float32),
        grid_spec=pltpu.PrefetchScalarGridSpec(
            num_scalar_prefetch=0,
            grid=(n_tiles,),
            in_specs=[
                pl.BlockSpec((obs_pad, tile), lambda i: (0, i)),    # x streams
                pl.BlockSpec((hidden, obs_pad), lambda i: (0, 0)),  # w1 resident
                pl.BlockSpec((hidden, 1), lambda i: (0, 0)),        # b1 resident
                pl.BlockSpec((act, hidden), lambda i: (0, 0)),      # w2 resident
                pl.BlockSpec((act, 1), lambda i: (0, 0)),           # b2 resident
            ],
            out_specs=pl.BlockSpec((act, tile), lambda i: (0, i)),
        ),
        compiler_params=pltpu.CompilerParams(
            dimension_semantics=("parallel",),   # batch tiles independent -> 2 TCs on v7x
        ),
    )(xt, w1p, b1c, w2c, b2c)

    return out_t.T[:B]


def init_params(key, obs_dim, hidden_dim, act_dim):
    """Mirror torch.nn.Linear default init: U[-1/sqrt(fan_in), 1/sqrt(fan_in)]."""
    k1, k2, k3, k4 = jax.random.split(key, 4)
    bound1 = 1.0 / jnp.sqrt(jnp.float32(obs_dim))
    bound2 = 1.0 / jnp.sqrt(jnp.float32(hidden_dim))
    w1 = jax.random.uniform(k1, (hidden_dim, obs_dim), jnp.float32, -bound1, bound1)
    b1 = jax.random.uniform(k2, (hidden_dim,), jnp.float32, -bound1, bound1)
    w2 = jax.random.uniform(k3, (act_dim, hidden_dim), jnp.float32, -bound2, bound2)
    b2 = jax.random.uniform(k4, (act_dim,), jnp.float32, -bound2, bound2)
    return w1, b1, w2, b2


def reference_forward(x, w1, b1, w2, b2):
    """Plain-JAX reference, same math as torch forward."""
    h = jnp.maximum(x @ w1.T + b1, 0.0)
    return h @ w2.T + b2


if __name__ == "__main__":
    # BipedalWalker-v3: obs_shape=(24,), action_shape=(4,)
    obs_dim, hidden_dim, act_dim = 24, 32, 4

    key = jax.random.PRNGKey(0)
    kx, kp = jax.random.split(key)
    w1, b1, w2, b2 = init_params(kp, obs_dim, hidden_dim, act_dim)

    # 1) Small-batch correctness check, f32 compute path.
    batch = 8
    x = jax.random.normal(kx, (batch, obs_dim), jnp.float32)
    out = actor_forward(x, w1, b1, w2, b2, compute_dtype=jnp.float32)
    jax.block_until_ready(out)
    ref = reference_forward(x, w1, b1, w2, b2)
    assert out.shape == (batch, act_dim)
    assert jnp.allclose(out, ref, atol=1e-5, rtol=1e-5)

    # 2) Larger, non-multiple batch exercising the grid / padding path.
    batch2 = 1000
    x2 = jax.random.normal(kx, (batch2, obs_dim), jnp.float32)
    out2 = actor_forward(x2, w1, b1, w2, b2, compute_dtype=jnp.float32)
    jax.block_until_ready(out2)
    ref2 = reference_forward(x2, w1, b1, w2, b2)
    assert out2.shape == (batch2, act_dim)
    assert jnp.allclose(out2, ref2, atol=1e-4, rtol=1e-4)

    # 3) bf16-input path (recommended for large rollout batches: halves HBM bytes,
    #    MXU still accumulates in f32). Reference mirrors the same input casts.
    out_bf = actor_forward(x2, w1, b1, w2, b2, compute_dtype=jnp.bfloat16)
    jax.block_until_ready(out_bf)
    xb = x2.astype(jnp.bfloat16).astype(jnp.float32)
    w1b = w1.astype(jnp.bfloat16).astype(jnp.float32)
    w2b = w2.astype(jnp.bfloat16).astype(jnp.float32)
    hb = jnp.maximum(xb @ w1b.T + b1, 0.0).astype(jnp.bfloat16).astype(jnp.float32)
    ref_bf = hb @ w2b.T + b2
    assert jnp.allclose(out_bf, ref_bf, atol=1e-3, rtol=1e-3)

    print("KERNEL_OK")
</pallas_src>

<mosaic_0001>
module attributes {stable_mosaic.version = 11 : i64} {
  func.func @actor_mlp_kernel(%arg0: i32, %arg1: memref<32x128xf32, #tpu.memory_space<vmem>>, %arg2: memref<32x32xf32, #tpu.memory_space<vmem>>, %arg3: memref<32x1xf32, #tpu.memory_space<vmem>>, %arg4: memref<4x32xf32, #tpu.memory_space<vmem>>, %arg5: memref<4x1xf32, #tpu.memory_space<vmem>>, %arg6: memref<4x128xf32, #tpu.memory_space<vmem>>) attributes {dimension_semantics = [#tpu.dimension_semantics<parallel>], iteration_bounds = array<i64: 1>, scalar_prefetch = 0 : i64, scratch_operands = 0 : i64, tpu.core_type = #tpu.core_type<tc>, window_params = [{transform_indices = @transform_0, window_bounds = array<i64: 32, 128>}, {pipeline_mode = #tpu.pipeline_mode<synchronous>, transform_indices = @transform_1, window_bounds = array<i64: 32, 32>}, {pipeline_mode = #tpu.pipeline_mode<synchronous>, transform_indices = @transform_2, window_bounds = array<i64: 32, 1>}, {pipeline_mode = #tpu.pipeline_mode<synchronous>, transform_indices = @transform_3, window_bounds = array<i64: 4, 32>}, {pipeline_mode = #tpu.pipeline_mode<synchronous>, transform_indices = @transform_4, window_bounds = array<i64: 4, 1>}, {transform_indices = @transform_5, window_bounds = array<i64: 4, 128>}]} {
    %c0 = arith.constant 0 : index
    %c0_0 = arith.constant 0 : index
    %0 = vector.load %arg2[%c0, %c0_0] : memref<32x32xf32, #tpu.memory_space<vmem>>, vector<32x32xf32>
    %c0_1 = arith.constant 0 : index
    %c0_2 = arith.constant 0 : index
    %1 = vector.load %arg1[%c0_1, %c0_2] : memref<32x128xf32, #tpu.memory_space<vmem>>, vector<32x128xf32>
    %cst = arith.constant dense<0.000000e+00> : vector<32x128xf32>
    %2 = tpu.matmul %0, %1, %cst {dimension_numbers = #tpu.dot_dimension_numbers<[1], [0], [0], [1], [0, 0, 1, 1], [], []>} : vector<32x32xf32>, vector<32x128xf32>, vector<32x128xf32> -> vector<32x128xf32>
    %c0_3 = arith.constant 0 : index
    %c0_4 = arith.constant 0 : index
    %3 = vector.load %arg3[%c0_3, %c0_4] : memref<32x1xf32, #tpu.memory_space<vmem>>, vector<32x1xf32>
    %4 = vector.broadcast %3 : vector<32x1xf32> to vector<32x128xf32>
    %5 = arith.addf %2, %4 : vector<32x128xf32>
    %cst_5 = arith.constant 0.000000e+00 : f32
    %6 = vector.broadcast %cst_5 : f32 to vector<32x128xf32>
    %7 = arith.maximumf %5, %6 : vector<32x128xf32>
    %c0_6 = arith.constant 0 : index
    %c0_7 = arith.constant 0 : index
    %8 = vector.load %arg4[%c0_6, %c0_7] : memref<4x32xf32, #tpu.memory_space<vmem>>, vector<4x32xf32>
    %cst_8 = arith.constant dense<0.000000e+00> : vector<4x128xf32>
    %9 = tpu.matmul %8, %7, %cst_8 {dimension_numbers = #tpu.dot_dimension_numbers<[1], [0], [0], [1], [0, 0, 1, 1], [], []>} : vector<4x32xf32>, vector<32x128xf32>, vector<4x128xf32> -> vector<4x128xf32>
    %c0_9 = arith.constant 0 : index
    %c0_10 = arith.constant 0 : index
    %10 = vector.load %arg5[%c0_9, %c0_10] : memref<4x1xf32, #tpu.memory_space<vmem>>, vector<4x1xf32>
    %11 = vector.broadcast %10 : vector<4x1xf32> to vector<4x128xf32>
    %12 = arith.addf %9, %11 : vector<4x128xf32>
    %c0_11 = arith.constant 0 : index
    %c0_12 = arith.constant 0 : index
    %13 = vector.load %arg6[%c0_11, %c0_12] : memref<4x128xf32, #tpu.memory_space<vmem>>, vector<4x128xf32>
    tpu.vector_store %arg6[%c0_11, %c0_12], %12 {strides = array<i32>} : memref<4x128xf32, #tpu.memory_space<vmem>>, vector<4x128xf32>,
    return
  }
  func.func @transform_0(%arg0: i32) -> (i32, i32) {
    %c0_i32 = arith.constant 0 : i32
    %c0_i32_0 = arith.constant 0 : i32
    return %c0_i32, %arg0 : i32, i32
  }
  func.func @transform_1(%arg0: i32) -> (i32, i32) {
    %c0_i32 = arith.constant 0 : i32
    %c0_i32_0 = arith.constant 0 : i32
    %c0_i32_1 = arith.constant 0 : i32
    return %c0_i32, %c0_i32_0 : i32, i32
  }
  func.func @transform_2(%arg0: i32) -> (i32, i32) {
    %c0_i32 = arith.constant 0 : i32
    %c0_i32_0 = arith.constant 0 : i32
    %c0_i32_1 = arith.constant 0 : i32
    return %c0_i32, %c0_i32_0 : i32, i32
  }
  func.func @transform_3(%arg0: i32) -> (i32, i32) {
    %c0_i32 = arith.constant 0 : i32
    %c0_i32_0 = arith.constant 0 : i32
    %c0_i32_1 = arith.constant 0 : i32
    return %c0_i32, %c0_i32_0 : i32, i32
  }
  func.func @transform_4(%arg0: i32) -> (i32, i32) {
    %c0_i32 = arith.constant 0 : i32
    %c0_i32_0 = arith.constant 0 : i32
    %c0_i32_1 = arith.constant 0 : i32
    return %c0_i32, %c0_i32_0 : i32, i32
  }
  func.func @transform_5(%arg0: i32) -> (i32, i32) {
    %c0_i32 = arith.constant 0 : i32
    %c0_i32_0 = arith.constant 0 : i32
    return %c0_i32, %arg0 : i32, i32
  }
}

</mosaic_0001>

<llo_original>
// kernel: actor_forward.1
$region0: #{actor_forward.1}
  #allocation0 [shape = 'u32[]', space=smem, size = 0x4, offset = 0x4, fixed_abs, tag = 'smem constant byte address 0x4 - core index']
  #allocation1 [shape = 'u32[144,128]{1,0:T(1,128)}', space=vmem, size = 0x12000, scoped, tag = 'internal scratch']
  %s0 = inlined_call_operand.vmem [shape: f32[32,128], index: 0, kind: input, shape index: {}]
  %s1 = inlined_call_operand.vmem [shape: f32[32,32], index: 1, kind: input, shape index: {}]
  %s2 = inlined_call_operand.vmem [shape: f32[32,1], index: 2, kind: input, shape index: {}]
  %s3 = inlined_call_operand.vmem [shape: f32[4,32], index: 3, kind: input, shape index: {}]
  %s4 = inlined_call_operand.vmem [shape: f32[4,1], index: 4, kind: input, shape index: {}]
  %s5 = inlined_call_operand.hbm [shape: f32[4,128], index: 5, kind: output, shape index: {}]
  %s6 = sld [smem:[#allocation0]]
  $region30: #{actor_forward.1} parent=0
    _
  %s8 = ssub.s32 1, %s6
  %s9 = scalar_select 0, %s8, %s6
  $region1: #{actor_forward.1} parent=0
    #allocation2 [shape = 'u8[2048]{0}', space=vmem, size = 0x800, scoped, tag = 'output window, operand 0, single buffered']
    #allocation3 [shape = 's32[1]{0}', space=sflag, size = 0x4, scoped, tag = 'scoped memory for actor_forward.1']
    %10 = vsyncpa [#allocation3], 0
    // Predicated region
    $region2: #{actor_forward.1} parent=1 // pred_check
      _
    $region3: #{actor_forward.1} parent=1 // pred_check_branch
      %12 = sbr.rel (0) target = $region5
    $region4: #{actor_forward.1} parent=1 // pred_region
      _
    $region5: #{actor_forward.1} parent=1 // pred_fallthru
      _
    // Predicated region
    $region6: #{actor_forward.1} parent=1 // pred_check
      _
    $region7: #{actor_forward.1} parent=1 // pred_check_branch
      %14 = sbr.rel (0) target = $region9
    $region8: #{actor_forward.1} parent=1 // pred_region
      _
    $region9: #{actor_forward.1} parent=1 // pred_fallthru
      _
    // Predicated region
    $region10: #{actor_forward.1} parent=1 // pred_check
      _
    $region11: #{actor_forward.1} parent=1 // pred_check_branch
      %16 = sbr.rel (0) target = $region13
    $region12: #{actor_forward.1} parent=1 // pred_region
      _
    $region13: #{actor_forward.1} parent=1 // pred_fallthru
      _
    // Predicated region
    $region14: #{actor_forward.1} parent=1 // pred_check
      _
    $region15: #{actor_forward.1} parent=1 // pred_check_branch
      %18 = sbr.rel (0) target = $region17
    $region16: #{actor_forward.1} parent=1 // pred_region
      _
    $region17: #{actor_forward.1} parent=1 // pred_fallthru
      _
    // Predicated region
    $region18: #{actor_forward.1} parent=1 // pred_check
      _
    $region19: #{actor_forward.1} parent=1 // pred_check_branch
      %20 = sbr.rel (0) target = $region21
    $region20: #{actor_forward.1} parent=1 // pred_region
      _
    $region21: #{actor_forward.1} parent=1 // pred_fallthru
      _
    %v21 = vld [vmem:[%s1] sm:$0xff]
    %v22 = vld [vmem:[%s1 + $0x8] sm:$0xff]
    %v23 = vld [vmem:[%s1 + $0x10] sm:$0xff]
    %v24 = vld [vmem:[%s1 + $0x18] sm:$0xff]
    %v25 = vld [vmem:[%s0] sm:$0xff]
    %v26 = vld [vmem:[%s0 + $0x8] sm:$0xff]
    %v27 = vld [vmem:[%s0 + $0x10] sm:$0xff]
    %v28 = vld [vmem:[%s0 + $0x18] sm:$0xff]
    %v29 = vld [vmem:[%s2] sm:$0xff]
    %v30 = vld [vmem:[%s2 + $0x8] sm:$0xff]
    %v31 = vld [vmem:[%s2 + $0x10] sm:$0xff]
    %v32 = vld [vmem:[%s2 + $0x18] sm:$0xff]
    %34 = vset.pattern.permute.xlu0 0
    %35 = vperm.xlu0 %34, %v29
    %v36 = vpop.permute.xlu0 %35
    %39 = vset.pattern.permute.xlu0 0
    %40 = vperm.xlu0 %39, %v30
    %v41 = vpop.permute.xlu0 %40
    %44 = vset.pattern.permute.xlu0 0
    %45 = vperm.xlu0 %44, %v31
    %v46 = vpop.permute.xlu0 %45
    %49 = vset.pattern.permute.xlu0 0
    %50 = vperm.xlu0 %49, %v32
    %v51 = vpop.permute.xlu0 %50
    %vm53 = vcmask 261120
    %v55 = vsel %vm53, %v21, 0
    %v58 = vsel %vm53, %v22, 0
    %v61 = vsel %vm53, %v23, 0
    %v64 = vsel %vm53, %v24, 0
    %66 = vmatprep.subr.mxu0 0.0
    %67 = vmatpush1.msra.mxu0 %v25
    %68 = vmatprep.subr.mxu0 0.0
    %69 = vmatpush1.msra.mxu0 %v26
    %70 = vmatprep.subr.mxu0 0.0
    %71 = vmatpush1.msra.mxu0 %v27
    %72 = vmatprep.subr.mxu0 0.0
    %73 = vmatpush1.msra.mxu0 %v28
    %74 = vmatprep.subr.mxu0 0.0
    %75 = vmatpush1.msra.mxu0 0.0
    %76 = vmatprep.subr.mxu0 0.0
    %77 = vmatpush1.msra.mxu0 0.0
    %78 = vmatprep.subr.mxu0 0.0
    %79 = vmatpush1.msra.mxu0 0.0
    %80 = vmatprep.subr.mxu0 0.0
    %81 = vmatpush1.msra.mxu0 0.0
    %82 = vmatprep.subr.mxu0 0.0
    %83 = vmatpush1.msra.mxu0 0.0
    %84 = vmatprep.subr.mxu0 0.0
    %85 = vmatpush1.msra.mxu0 0.0
    %86 = vmatprep.subr.mxu0 0.0
    %87 = vmatpush1.msra.mxu0 0.0
    %88 = vmatprep.subr.mxu0 0.0
    %89 = vmatpush1.msra.mxu0 0.0
    %90 = vmatprep.subr.mxu0 0.0
    %91 = vmatpush1.msra.mxu0 0.0
    %92 = vmatprep.subr.mxu0 0.0
    %93 = vmatpush1.msra.mxu0 0.0
    %94 = vmatprep.subr.mxu0 0.0
    %95 = vmatpush1.msra.mxu0 0.0
    %96 = vmatprep.subr.mxu0 0.0
    %97 = vmatpush1.msra.mxu0 0.0
    %98 = vmatprep.subr.mxu0 0.0
    %99 = vmatpush1.msra.mxu0 0.0
    %100 = vmatprep.subr.mxu0 0.0
    %101 = vmatpush1.msra.mxu0 0.0
    %102 = vmatprep.subr.mxu0 0.0
    %103 = vmatpush1.msra.mxu0 0.0
    %104 = vmatprep.subr.mxu0 0.0
    %105 = vmatpush1.msra.mxu0 0.0
    %106 = vmatprep.subr.mxu0 0.0
    %107 = vmatpush1.msra.mxu0 0.0
    %108 = vmatprep.subr.mxu0 0.0
    %109 = vmatpush1.msra.mxu0 0.0
    %110 = vmatprep.subr.mxu0 0.0
    %111 = vmatpush1.msra.mxu0 0.0
    %112 = vmatprep.subr.mxu0 0.0
    %113 = vmatpush1.msra.mxu0 0.0
    %114 = vmatprep.subr.mxu0 0.0
    %115 = vmatpush1.msra.mxu0 0.0
    %116 = vmatprep.subr.mxu0 0.0
    %117 = vmatpush1.msra.mxu0 0.0
    %118 = vmatprep.subr.mxu0 0.0
    %119 = vmatpush1.msra.mxu0 0.0
    %120 = vmatprep.subr.mxu0 0.0
    %121 = vmatpush1.msra.mxu0 0.0
    %122 = vmatprep.subr.mxu0 0.0
    %123 = vmatpush1.msra.mxu0 0.0
    %124 = vmatprep.subr.mxu0 0.0
    %125 = vmatpush1.msra.mxu0 0.0
    %126 = vmatprep.subr.mxu0 0.0
    %127 = vmatpush1.msra.mxu0 0.0
    %128 = vmatprep.subr.mxu0 0.0
    %129 = vmatpush1.msra.mxu0 0.0
    %130 = vmatprep.mubr.f32.mxu0 0.0
    %131 = vmatmul.mubr.f32.gmra.mrb[0].mxu0 %v55
    %v132 = vpop.f32.mrb[0].mxu0
    %v133 = vadd.f32 %v36, %v132
    %v134 = vpop.f32.mrb[0].mxu0
    %135 = vmatprep.mubr.f32.mxu0 0.0
    %136 = vmatmul.mubr.f32.gmra.mrb[0].mxu0 %v58
    %v137 = vpop.f32.mrb[0].mxu0
    %v138 = vadd.f32 %v41, %v137
    %v139 = vpop.f32.mrb[0].mxu0
    %140 = vmatprep.mubr.f32.mxu0 0.0
    %141 = vmatmul.mubr.f32.gmra.mrb[0].mxu0 %v61
    %v142 = vpop.f32.mrb[0].mxu0
    %v143 = vadd.f32 %v46, %v142
    %v144 = vpop.f32.mrb[0].mxu0
    %145 = vmatprep.mubr.f32.mxu0 0.0
    %146 = vmatmul.mubr.f32.gmra.mrb[0].mxu0 %v64
    %v147 = vpop.f32.mrb[0].mxu0
    %v148 = vadd.f32 %v51, %v147
    %v149 = vpop.f32.mrb[0].mxu0
    %150 = vdwg.mxu0
    %v151 = vmax.f32 %v133, 0.0
    %v152 = vmax.f32 %v138, 0.0
    %v153 = vmax.f32 %v143, 0.0
    %v154 = vmax.f32 %v148, 0.0
    %v155 = vld [vmem:[%s3] sm:$0xf]
    %v156 = vld [vmem:[%s4] sm:$0xf]
    %158 = vset.pattern.permute.xlu0 0
    %159 = vperm.xlu0 %158, %v156
    %v160 = vpop.permute.xlu0 %159
    %v163 = vsel %vm53, %v155, 0
    %165 = vmatprep.subr.mxu0 0.0
    %166 = vmatpush1.msra.mxu0 %v151
    %167 = vmatprep.subr.mxu0 0.0
    %168 = vmatpush1.msra.mxu0 %v152
    %169 = vmatprep.subr.mxu0 0.0
    %170 = vmatpush1.msra.mxu0 %v153
    %171 = vmatprep.subr.mxu0 0.0
    %172 = vmatpush1.msra.mxu0 %v154
    %173 = vmatprep.subr.mxu0 0.0
    %174 = vmatpush1.msra.mxu0 0.0
    %175 = vmatprep.subr.mxu0 0.0
    %176 = vmatpush1.msra.mxu0 0.0
    %177 = vmatprep.subr.mxu0 0.0
    %178 = vmatpush1.msra.mxu0 0.0
    %179 = vmatprep.subr.mxu0 0.0
    %180 = vmatpush1.msra.mxu0 0.0
    %181 = vmatprep.subr.mxu0 0.0
    %182 = vmatpush1.msra.mxu0 0.0
    %183 = vmatprep.subr.mxu0 0.0
    %184 = vmatpush1.msra.mxu0 0.0
    %185 = vmatprep.subr.mxu0 0.0
    %186 = vmatpush1.msra.mxu0 0.0
    %187 = vmatprep.subr.mxu0 0.0
    %188 = vmatpush1.msra.mxu0 0.0
    %189 = vmatprep.subr.mxu0 0.0
    %190 = vmatpush1.msra.mxu0 0.0
    %191 = vmatprep.subr.mxu0 0.0
    %192 = vmatpush1.msra.mxu0 0.0
    %193 = vmatprep.subr.mxu0 0.0
    %194 = vmatpush1.msra.mxu0 0.0
    %195 = vmatprep.subr.mxu0 0.0
    %196 = vmatpush1.msra.mxu0 0.0
    %197 = vmatprep.subr.mxu0 0.0
    %198 = vmatpush1.msra.mxu0 0.0
    %199 = vmatprep.subr.mxu0 0.0
    %200 = vmatpush1.msra.mxu0 0.0
    %201 = vmatprep.subr.mxu0 0.0
    %202 = vmatpush1.msra.mxu0 0.0
    %203 = vmatprep.subr.mxu0 0.0
    %204 = vmatpush1.msra.mxu0 0.0
    %205 = vmatprep.subr.mxu0 0.0
    %206 = vmatpush1.msra.mxu0 0.0
    %207 = vmatprep.subr.mxu0 0.0
    %208 = vmatpush1.msra.mxu0 0.0
    %209 = vmatprep.subr.mxu0 0.0
    %210 = vmatpush1.msra.mxu0 0.0
    %211 = vmatprep.subr.mxu0 0.0
    %212 = vmatpush1.msra.mxu0 0.0
    %213 = vmatprep.subr.mxu0 0.0
    %214 = vmatpush1.msra.mxu0 0.0
    %215 = vmatprep.subr.mxu0 0.0
    %216 = vmatpush1.msra.mxu0 0.0
    %217 = vmatprep.subr.mxu0 0.0
    %218 = vmatpush1.msra.mxu0 0.0
    %219 = vmatprep.subr.mxu0 0.0
    %220 = vmatpush1.msra.mxu0 0.0
    %221 = vmatprep.subr.mxu0 0.0
    %222 = vmatpush1.msra.mxu0 0.0
    %223 = vmatprep.subr.mxu0 0.0
    %224 = vmatpush1.msra.mxu0 0.0
    %225 = vmatprep.subr.mxu0 0.0
    %226 = vmatpush1.msra.mxu0 0.0
    %227 = vmatprep.subr.mxu0 0.0
    %228 = vmatpush1.msra.mxu0 0.0
    %229 = vmatprep.mubr.f32.mxu0 0.0
    %230 = vmatmul.mubr.f32.gmra.mrb[0].mxu0 %v163
    %v231 = vpop.f32.mrb[0].mxu0
    %v232 = vadd.f32 %v160, %v231
    %v233 = vpop.f32.mrb[0].mxu0
    %234 = vdwg.mxu0
    %235 = vst [vmem:[#allocation2] sm:$0xf] %v232
    // Predicated region
    $region22: #{actor_forward.1} parent=1 // pred_check
      _
    $region23: #{actor_forward.1} parent=1 // pred_check_branch
      %237 = sbr.rel (0) target = $region25
    $region24: #{actor_forward.1} parent=1 // pred_region
      %s239 = ssub.s32 64, 64
      %240 = vsyncadd [#allocation3], %s239
      %s242 = sshll.u32 [#allocation2], 4
      %s243 = int_to_ptr.vmem [resolvable:$true] %s242
      %245 = dma.vmem_to_hbm [thread:$0]  %s243, 64, %s5, [#allocation3]
    $region25: #{actor_forward.1} parent=1 // pred_fallthru
      _
    // Predicated region
    $region26: #{actor_forward.1} parent=1 // pred_check
      _
    $region27: #{actor_forward.1} parent=1 // pred_check_branch
      %247 = sbr.rel (0) target = $region29
    $region28: #{actor_forward.1} parent=1 // pred_region
      %248 = dma.done [#allocation3], 64
    $region29: #{actor_forward.1} parent=1 // pred_fallthru
      _
    %249 = vsyncpa [#allocation3], 1

</llo_original>
